<compile_context>
chip_gen: v7x
topology: tpu7x:2x2x1
jax: 0.10.0
libtpu: 0.0.40
codegen_flags: <defaults>
</compile_context>

<pallas_src>
import functools

import jax
import jax.numpy as jnp
from jax.experimental import pallas as pl
from jax.experimental.pallas import tpu as pltpu

EPS = 1e-6


def _grouping_kernel(f_ref, a_ref, c_ref, g_ref, w_ref,
                     sf_ref, sa_ref, ma_ref,
                     *, tile_n, n_valid, needs_mask, use_mxu):
    """Grid = (batch tiles, N tiles).  f_ref (Bt,tn,D), a_ref (Bt,tn,1), c_ref (K,D)."""
    n_idx = pl.program_id(1)

    @pl.when(n_idx == 0)
    def _init():
        sf_ref[...] = jnp.zeros_like(sf_ref)
        sa_ref[...] = jnp.zeros_like(sa_ref)
        ma_ref[...] = jnp.full(ma_ref.shape, -jnp.inf, ma_ref.dtype)

    f = f_ref[...]                                    # (Bt, tn, D)
    att = a_ref[...].astype(jnp.float32)              # (Bt, tn, 1)

    if needs_mask:
        # Tail tile: rows >= N come from an out-of-bounds (stale VMEM) read.
        # Mask both operands so no garbage (possibly inf/NaN) reaches the sums.
        rows = n_idx * tile_n + jax.lax.broadcasted_iota(
            jnp.int32, (1, tile_n, 1), 1)
        valid = rows < n_valid                         # (1, tn, 1)
        att_max = jnp.where(valid, att, -jnp.inf)
        att = jnp.where(valid, att, 0.0)
        f = jnp.where(valid, f, jnp.zeros_like(f))
    else:
        att_max = att

    if use_mxu:
        # Large tiles: stream the N-reduction through the MXU as a batched
        # (1, tn) x (tn, D) matmul, accumulating in f32.
        sf = jax.lax.dot_general(
            att.astype(f.dtype), f,
            dimension_numbers=(((1,), (1,)), ((0,), (0,))),
            preferred_element_type=jnp.float32)[:, 0, :]          # (Bt, D)
    else:
        # Small tiles: VPU multiply + reduce (MXU M=1 padding not worth it).
        sf = jnp.sum(att * f.astype(jnp.float32), axis=1)         # (Bt, D)

    sf_ref[...] += sf                                              # sum_n att*f
    sa_ref[...] += jnp.sum(att, axis=1)                            # sum_n att
    ma_ref[...] = jnp.maximum(ma_ref[...], jnp.max(att_max, axis=1))  # max_n att

    @pl.when(n_idx == pl.num_programs(1) - 1)
    def _finalize():
        c = c_ref[...].astype(jnp.float32)                         # (K, D)
        sf_all = sf_ref[...]                                       # (Bt, D)
        sa_all = sa_ref[...]                                       # (Bt, 1)
        # 'resatt' + uniform assignment:
        #   desc_b = sum_n att_bn * f_bn - (sum_n att_bn) * C
        desc = sf_all[:, None, :] - sa_all[:, :, None] * c[None, :, :]  # (Bt,K,D)
        # 'l2norm' descriptor (exact division; epilogue is tiny & off hot path)
        norm = jnp.sqrt(jnp.sum(desc * desc, axis=2, keepdims=True))
        g_ref[...] = (desc / (norm + EPS)).astype(g_ref.dtype)
        # 'maxassatt' with uniform assignment == max(att) broadcast over K
        bt = sf_all.shape[0]
        k = c.shape[0]
        w_ref[...] = jnp.broadcast_to(ma_ref[...][:, :, None], (bt, 1, k)).astype(
            w_ref.dtype)


def _choose_tiles(B, N, D, block_rows=None,
                  target_block_bytes=4 * 1024 * 1024, max_target_rows=4096):
    """Pick (Bt, tn): ~4 MiB feature blocks, tn % 8 == 0 (or tn == N),
    batch several small images per grid step to amortize per-step overhead."""
    max_rows = max(8, min(max_target_rows, target_block_bytes // (4 * max(D, 1))))
    max_rows -= max_rows % 8
    if block_rows is not None:
        tn = block_rows
    elif N <= max_rows:
        tn = N                                   # full extent: always legal
    else:
        tn = max_rows                            # multiple of 8; tail is masked
    bt = max(1, min(B, max(max_rows, tn) // max(tn, 1)))
    while B % bt != 0:
        bt -= 1
    return bt, tn


def grouping_pallas(feats, atts, centroids, *, block_rows=None):
    """feats (B,N,D), atts (B,N,1), centroids (K,D).
    Returns grouped (B,K,D) f32, weights (B,K) f32."""
    B, N, D = feats.shape
    K = centroids.shape[0]
    Bt, tn = _choose_tiles(B, N, D, block_rows=block_rows)
    n_steps = pl.cdiv(N, tn)
    needs_mask = (N % tn) != 0
    use_mxu = tn >= 512

    kernel = functools.partial(
        _grouping_kernel, tile_n=tn, n_valid=N,
        needs_mask=needs_mask, use_mxu=use_mxu)

    grouped, weights = pl.pallas_call(
        kernel,
        out_shape=(
            jax.ShapeDtypeStruct((B, K, D), jnp.float32),
            jax.ShapeDtypeStruct((B, 1, K), jnp.float32),
        ),
        grid_spec=pltpu.PrefetchScalarGridSpec(
            num_scalar_prefetch=0,
            grid=(B // Bt, n_steps),
            in_specs=[
                pl.BlockSpec((Bt, tn, D), lambda b, n: (b, n, 0)),
                pl.BlockSpec((Bt, tn, 1), lambda b, n: (b, n, 0)),
                pl.BlockSpec((K, D), lambda b, n: (0, 0)),   # constant block, no re-DMA
            ],
            out_specs=[
                pl.BlockSpec((Bt, K, D), lambda b, n: (b, 0, 0)),
                pl.BlockSpec((Bt, 1, K), lambda b, n: (b, 0, 0)),
            ],
            scratch_shapes=[
                pltpu.VMEM((Bt, D), jnp.float32),   # sum(att * f)
                pltpu.VMEM((Bt, 1), jnp.float32),   # sum(att)
                pltpu.VMEM((Bt, 1), jnp.float32),   # max(att)
            ],
        ),
        compiler_params=pltpu.CompilerParams(
            dimension_semantics=("parallel", "arbitrary"),
        ),
    )(feats, atts, centroids)
    return grouped, weights[:, 0, :]


def grouping_reference(feats, atts, centroids):
    """Pure-JAX literal transcription of the PyTorch dense path (for checking)."""
    def per_image(f, a):
        k = centroids.shape[0]
        ass = jnp.ones((f.shape[0], k), f.dtype)
        feat = a[:, None, :] * (f[:, None, :] - centroids[None, :, :])
        desc = jnp.sum(feat * ass[:, :, None], axis=0)
        g = desc / (jnp.linalg.norm(desc, axis=1, keepdims=True) + EPS)
        w = jnp.max(ass * a, axis=0)
        return g, w
    return jax.vmap(per_image)(feats, atts)


def _make_inputs(key, B, C, H, W):
    kf, ka = jax.random.split(key, 2)
    # Per-image CHW conv feature maps and 1xHxW attention maps (NCHW convention).
    fmaps = jax.random.normal(kf, (B, C, H, W), jnp.float32)
    amaps = jax.nn.sigmoid(jax.random.normal(ka, (B, 1, H, W), jnp.float32))
    # Replicate Grouping.forward() flattening: (C,H,W) -> (H*W, C), att -> (H*W, 1)
    feats = jnp.transpose(fmaps.reshape(B, C, H * W), (0, 2, 1))  # (B, N, D)
    atts = amaps.reshape(B, H * W, 1)                              # (B, N, 1)
    return feats, atts


if __name__ == "__main__":
    B, C, K = 2, 128, 8
    key = jax.random.PRNGKey(0)
    k0, k1, k2, kc = jax.random.split(key, 4)
    # Deterministically initialized centroids (shape (K, C), as __init__ implies).
    centroids = jax.random.normal(kc, (K, C), jnp.float32)

    run = jax.jit(grouping_pallas, static_argnames=("block_rows",))

    # Case 1: 8x8 map (N=64) -- single block, VPU reduction.
    feats, atts = _make_inputs(k0, B, C, 8, 8)
    grouped, weights = run(feats, atts, centroids)
    jax.block_until_ready((grouped, weights))
    g_ref, w_ref = grouping_reference(feats, atts, centroids)
    assert jnp.allclose(grouped, g_ref, atol=1e-4, rtol=1e-4), "grouped mismatch (case 1)"
    assert jnp.allclose(weights, w_ref, atol=1e-5, rtol=1e-5), "weights mismatch (case 1)"

    # Case 2: 9x9 map (N=81, ragged) with forced small tiles -- tail-masked path.
    feats, atts = _make_inputs(k1, B, C, 9, 9)
    grouped, weights = run(feats, atts, centroids, block_rows=32)
    jax.block_until_ready((grouped, weights))
    g_ref, w_ref = grouping_reference(feats, atts, centroids)
    assert jnp.allclose(grouped, g_ref, atol=1e-4, rtol=1e-4), "grouped mismatch (case 2)"
    assert jnp.allclose(weights, w_ref, atol=1e-5, rtol=1e-5), "weights mismatch (case 2)"

    # Case 3: 32x32 map (N=1024) with 512-row tiles -- multi-step MXU accumulation.
    feats, atts = _make_inputs(k2, B, C, 32, 32)
    grouped, weights = run(feats, atts, centroids, block_rows=512)
    jax.block_until_ready((grouped, weights))
    g_ref, w_ref = grouping_reference(feats, atts, centroids)
    assert jnp.allclose(grouped, g_ref, atol=1e-4, rtol=1e-4), "grouped mismatch (case 3)"
    assert jnp.allclose(weights, w_ref, atol=1e-5, rtol=1e-5), "weights mismatch (case 3)"

    print("KERNEL_OK")
</pallas_src>

<mosaic_0001>
module attributes {stable_mosaic.version = 11 : i64} {
  func.func @_grouping_kernel(%arg0: i32, %arg1: i32, %arg2: memref<2x64x128xf32, #tpu.memory_space<vmem>>, %arg3: memref<2x64x1xf32, #tpu.memory_space<vmem>>, %arg4: memref<8x128xf32, #tpu.memory_space<vmem>>, %arg5: memref<2x8x128xf32, #tpu.memory_space<vmem>>, %arg6: memref<2x1x8xf32, #tpu.memory_space<vmem>>, %arg7: memref<2x128xf32, #tpu.memory_space<vmem>>, %arg8: memref<2x1xf32, #tpu.memory_space<vmem>>, %arg9: memref<2x1xf32, #tpu.memory_space<vmem>>) attributes {dimension_semantics = [#tpu.dimension_semantics<parallel>, #tpu.dimension_semantics<arbitrary>], iteration_bounds = array<i64: 1, 1>, scalar_prefetch = 0 : i64, scratch_operands = 3 : i64, tpu.core_type = #tpu.core_type<tc>, window_params = [{transform_indices = @transform_0, window_bounds = array<i64: 2, 64, 128>}, {transform_indices = @transform_1, window_bounds = array<i64: 2, 64, 1>}, {pipeline_mode = #tpu.pipeline_mode<synchronous>, transform_indices = @transform_2, window_bounds = array<i64: 8, 128>}, {transform_indices = @transform_3, window_bounds = array<i64: 2, 8, 128>}, {transform_indices = @transform_4, window_bounds = array<i64: 2, 1, 8>}]} {
    %c0_i32 = arith.constant 0 : i32
    %0 = arith.cmpi eq, %arg1, %c0_i32 : i32
    %1 = arith.extui %0 : i1 to i32
    %c0_i32_0 = arith.constant 0 : i32
    %2 = arith.cmpi ne, %1, %c0_i32_0 : i32
    scf.if %2 {
      %cst_22 = arith.constant 0.000000e+00 : f32
      %22 = vector.broadcast %cst_22 : f32 to vector<2x128xf32>
      %c0_23 = arith.constant 0 : index
      %c0_24 = arith.constant 0 : index
      %23 = vector.load %arg7[%c0_23, %c0_24] : memref<2x128xf32, #tpu.memory_space<vmem>>, vector<2x128xf32>
      tpu.vector_store %arg7[%c0_23, %c0_24], %22 {strides = array<i32>} : memref<2x128xf32, #tpu.memory_space<vmem>>, vector<2x128xf32>,
      %cst_25 = arith.constant 0.000000e+00 : f32
      %24 = vector.broadcast %cst_25 : f32 to vector<2x1xf32>
      %c0_26 = arith.constant 0 : index
      %c0_27 = arith.constant 0 : index
      %25 = vector.load %arg8[%c0_26, %c0_27] : memref<2x1xf32, #tpu.memory_space<vmem>>, vector<2x1xf32>
      tpu.vector_store %arg8[%c0_26, %c0_27], %24 {strides = array<i32>} : memref<2x1xf32, #tpu.memory_space<vmem>>, vector<2x1xf32>,
      %cst_28 = arith.constant 0xFF800000 : f32
      %26 = vector.broadcast %cst_28 : f32 to vector<2x1xf32>
      %c0_29 = arith.constant 0 : index
      %c0_30 = arith.constant 0 : index
      %27 = vector.load %arg9[%c0_29, %c0_30] : memref<2x1xf32, #tpu.memory_space<vmem>>, vector<2x1xf32>
      tpu.vector_store %arg9[%c0_29, %c0_30], %26 {strides = array<i32>} : memref<2x1xf32, #tpu.memory_space<vmem>>, vector<2x1xf32>,
    } else {
    }
    %c0 = arith.constant 0 : index
    %c0_1 = arith.constant 0 : index
    %c0_2 = arith.constant 0 : index
    %3 = vector.load %arg2[%c0, %c0_1, %c0_2] : memref<2x64x128xf32, #tpu.memory_space<vmem>>, vector<2x64x128xf32>
    %c0_3 = arith.constant 0 : index
    %c0_4 = arith.constant 0 : index
    %c0_5 = arith.constant 0 : index
    %4 = vector.load %arg3[%c0_3, %c0_4, %c0_5] : memref<2x64x1xf32, #tpu.memory_space<vmem>>, vector<2x64x1xf32>
    %5 = vector.broadcast %4 : vector<2x64x1xf32> to vector<2x64x128xf32>
    %6 = arith.mulf %5, %3 : vector<2x64x128xf32>
    %cst = arith.constant dense<0.000000e+00> : vector<2x128xf32>
    %7 = vector.multi_reduction <add>, %6, %cst [1] : vector<2x64x128xf32> to vector<2x128xf32>
    %c0_6 = arith.constant 0 : index
    %c0_7 = arith.constant 0 : index
    %8 = vector.load %arg7[%c0_6, %c0_7] : memref<2x128xf32, #tpu.memory_space<vmem>>, vector<2x128xf32>
    %9 = arith.addf %8, %7 : vector<2x128xf32>
    %c0_8 = arith.constant 0 : index
    %c0_9 = arith.constant 0 : index
    %10 = vector.load %arg7[%c0_8, %c0_9] : memref<2x128xf32, #tpu.memory_space<vmem>>, vector<2x128xf32>
    tpu.vector_store %arg7[%c0_8, %c0_9], %9 {strides = array<i32>} : memref<2x128xf32, #tpu.memory_space<vmem>>, vector<2x128xf32>,
    %c0_10 = arith.constant 0 : index
    %c0_11 = arith.constant 0 : index
    %11 = vector.load %arg8[%c0_10, %c0_11] : memref<2x1xf32, #tpu.memory_space<vmem>>, vector<2x1xf32>
    %cst_12 = arith.constant dense<0.000000e+00> : vector<2x1xf32>
    %12 = vector.multi_reduction <add>, %4, %cst_12 [1] : vector<2x64x1xf32> to vector<2x1xf32>
    %13 = arith.addf %11, %12 : vector<2x1xf32>
    %c0_13 = arith.constant 0 : index
    %c0_14 = arith.constant 0 : index
    %14 = vector.load %arg8[%c0_13, %c0_14] : memref<2x1xf32, #tpu.memory_space<vmem>>, vector<2x1xf32>
    tpu.vector_store %arg8[%c0_13, %c0_14], %13 {strides = array<i32>} : memref<2x1xf32, #tpu.memory_space<vmem>>, vector<2x1xf32>,
    %c0_15 = arith.constant 0 : index
    %c0_16 = arith.constant 0 : index
    %15 = vector.load %arg9[%c0_15, %c0_16] : memref<2x1xf32, #tpu.memory_space<vmem>>, vector<2x1xf32>
    %cst_17 = arith.constant dense<0xFF800000> : vector<2x1xf32>
    %16 = vector.multi_reduction <maximumf>, %4, %cst_17 [1] : vector<2x64x1xf32> to vector<2x1xf32>
    %17 = arith.maximumf %15, %16 : vector<2x1xf32>
    %c0_18 = arith.constant 0 : index
    %c0_19 = arith.constant 0 : index
    %18 = vector.load %arg9[%c0_18, %c0_19] : memref<2x1xf32, #tpu.memory_space<vmem>>, vector<2x1xf32>
    tpu.vector_store %arg9[%c0_18, %c0_19], %17 {strides = array<i32>} : memref<2x1xf32, #tpu.memory_space<vmem>>, vector<2x1xf32>,
    %c0_i32_20 = arith.constant 0 : i32
    %19 = arith.cmpi eq, %arg1, %c0_i32_20 : i32
    %20 = arith.extui %19 : i1 to i32
    %c0_i32_21 = arith.constant 0 : i32
    %21 = arith.cmpi ne, %20, %c0_i32_21 : i32
    scf.if %21 {
      %c0_22 = arith.constant 0 : index
      %c0_23 = arith.constant 0 : index
      %22 = vector.load %arg4[%c0_22, %c0_23] : memref<8x128xf32, #tpu.memory_space<vmem>>, vector<8x128xf32>
      %c0_24 = arith.constant 0 : index
      %c0_25 = arith.constant 0 : index
      %23 = vector.load %arg7[%c0_24, %c0_25] : memref<2x128xf32, #tpu.memory_space<vmem>>, vector<2x128xf32>
      %c0_26 = arith.constant 0 : index
      %c0_27 = arith.constant 0 : index
      %24 = vector.load %arg8[%c0_26, %c0_27] : memref<2x1xf32, #tpu.memory_space<vmem>>, vector<2x1xf32>
      %25 = vector.shape_cast %23 : vector<2x128xf32> to vector<2x1x128xf32>
      %26 = vector.shape_cast %24 : vector<2x1xf32> to vector<2x1x1xf32>
      %27 = vector.shape_cast %22 : vector<8x128xf32> to vector<1x8x128xf32>
      %28 = vector.broadcast %26 : vector<2x1x1xf32> to vector<2x8x128xf32>
      %29 = vector.broadcast %27 : vector<1x8x128xf32> to vector<2x8x128xf32>
      %30 = arith.mulf %28, %29 : vector<2x8x128xf32>
      %31 = vector.broadcast %25 : vector<2x1x128xf32> to vector<2x8x128xf32>
      %32 = arith.subf %31, %30 : vector<2x8x128xf32>
      %33 = arith.mulf %32, %32 : vector<2x8x128xf32>
      %cst_28 = arith.constant dense<0.000000e+00> : vector<2x8xf32>
      %34 = vector.multi_reduction <add>, %33, %cst_28 [2] : vector<2x8x128xf32> to vector<2x8xf32>
      %35 = vector.shape_cast %34 : vector<2x8xf32> to vector<2x8x1xf32>
      %36 = math.sqrt %35 : vector<2x8x1xf32>
      %cst_29 = arith.constant 9.99999997E-7 : f32
      %37 = vector.broadcast %cst_29 : f32 to vector<2x8x1xf32>
      %38 = arith.addf %36, %37 : vector<2x8x1xf32>
      %39 = vector.broadcast %38 : vector<2x8x1xf32> to vector<2x8x128xf32>
      %40 = arith.divf %32, %39 : vector<2x8x128xf32>
      %c0_30 = arith.constant 0 : index
      %c0_31 = arith.constant 0 : index
      %c0_32 = arith.constant 0 : index
      %41 = vector.load %arg5[%c0_30, %c0_31, %c0_32] : memref<2x8x128xf32, #tpu.memory_space<vmem>>, vector<2x8x128xf32>
      tpu.vector_store %arg5[%c0_30, %c0_31, %c0_32], %40 {strides = array<i32>} : memref<2x8x128xf32, #tpu.memory_space<vmem>>, vector<2x8x128xf32>,
      %c0_33 = arith.constant 0 : index
      %c0_34 = arith.constant 0 : index
      %42 = vector.load %arg9[%c0_33, %c0_34] : memref<2x1xf32, #tpu.memory_space<vmem>>, vector<2x1xf32>
      %43 = vector.shape_cast %42 : vector<2x1xf32> to vector<2x1x1xf32>
      %44 = vector.shape_cast %43 : vector<2x1x1xf32> to vector<2x1x1xf32>
      %45 = vector.broadcast %44 : vector<2x1x1xf32> to vector<2x1x8xf32>
      %c0_35 = arith.constant 0 : index
      %c0_36 = arith.constant 0 : index
      %c0_37 = arith.constant 0 : index
      %46 = vector.load %arg6[%c0_35, %c0_36, %c0_37] : memref<2x1x8xf32, #tpu.memory_space<vmem>>, vector<2x1x8xf32>
      tpu.vector_store %arg6[%c0_35, %c0_36, %c0_37], %45 {strides = array<i32>} : memref<2x1x8xf32, #tpu.memory_space<vmem>>, vector<2x1x8xf32>,
    } else {
    }
    return
  }
  func.func @transform_0(%arg0: i32, %arg1: i32) -> (i32, i32, i32) {
    %c0_i32 = arith.constant 0 : i32
    %c0_i32_0 = arith.constant 0 : i32
    return %arg0, %arg1, %c0_i32 : i32, i32, i32
  }
  func.func @transform_1(%arg0: i32, %arg1: i32) -> (i32, i32, i32) {
    %c0_i32 = arith.constant 0 : i32
    %c0_i32_0 = arith.constant 0 : i32
    return %arg0, %arg1, %c0_i32 : i32, i32, i32
  }
  func.func @transform_2(%arg0: i32, %arg1: i32) -> (i32, i32) {
    %c0_i32 = arith.constant 0 : i32
    %c0_i32_0 = arith.constant 0 : i32
    %c0_i32_1 = arith.constant 0 : i32
    return %c0_i32, %c0_i32_0 : i32, i32
  }
  func.func @transform_3(%arg0: i32, %arg1: i32) -> (i32, i32, i32) {
    %c0_i32 = arith.constant 0 : i32
    %c0_i32_0 = arith.constant 0 : i32
    %c0_i32_1 = arith.constant 0 : i32
    return %arg0, %c0_i32, %c0_i32_0 : i32, i32, i32
  }
  func.func @transform_4(%arg0: i32, %arg1: i32) -> (i32, i32, i32) {
    %c0_i32 = arith.constant 0 : i32
    %c0_i32_0 = arith.constant 0 : i32
    %c0_i32_1 = arith.constant 0 : i32
    return %arg0, %c0_i32, %c0_i32_0 : i32, i32, i32
  }
}

</mosaic_0001>

<llo_original>
// kernel: grouping_pallas.1
$region0: #{grouping_pallas.1}
  #allocation0 [shape = 'u32[]', space=smem, size = 0x4, offset = 0x4, fixed_abs, tag = 'smem constant byte address 0x4 - core index']
  #allocation1 [shape = 'u32[144,128]{1,0:T(1,128)}', space=vmem, size = 0x12000, scoped, tag = 'internal scratch']
  #allocation2 [shape = 'f32[2,128]{1,0:T(2,128)}', space=vmem, size = 0x400, scoped, tag = 'scratch operand']
  #allocation3 [shape = 'f32[2,1]{1,0:T(2,128)}', space=vmem, size = 0x400, scoped, tag = 'scratch operand']
  #allocation4 [shape = 'f32[2,1]{1,0:T(2,128)}', space=vmem, size = 0x400, scoped, tag = 'scratch operand']
  %s0 = inlined_call_operand.vmem [shape: f32[2,64,128], index: 0, kind: input, shape index: {}]
  %s1 = inlined_call_operand.vmem [shape: f32[2,64,1], index: 1, kind: input, shape index: {}]
  %s2 = inlined_call_operand.vmem [shape: f32[8,128], index: 2, kind: input, shape index: {}]
  %s3 = inlined_call_operand.hbm [shape: f32[2,8,128], index: 3, kind: output, shape index: {0}]
  %s4 = inlined_call_operand.hbm [shape: f32[2,1,8], index: 4, kind: output, shape index: {1}]
  %5 = xla_tuple %s3, %s4
  %s6 = sld [smem:[#allocation0]]
  $region38: #{grouping_pallas.1} parent=0
    _
  %s8 = ssub.s32 1, %s6
  %s9 = scalar_select 0, %s8, %s6
  $region1: #{grouping_pallas.1} parent=0
    #allocation5 [shape = 'u8[8192]{0}', space=vmem, size = 0x2000, scoped, tag = 'output window, operand 0, single buffered']
    #allocation6 [shape = 's32[1]{0}', space=sflag, size = 0x4, scoped, tag = 'scoped memory for grouping_pallas.1']
    #allocation7 [shape = 'u8[1024]{0}', space=vmem, size = 0x400, scoped, tag = 'output window, operand 1, single buffered']
    #allocation8 [shape = 's32[1]{0}', space=sflag, size = 0x4, scoped, tag = 'scoped memory for grouping_pallas.1']
    %10 = vsyncpa [#allocation6], 0
    %11 = vsyncpa [#allocation8], 0
    // Predicated region
    $region2: #{grouping_pallas.1} parent=1 // pred_check
      _
    $region3: #{grouping_pallas.1} parent=1 // pred_check_branch
      %13 = sbr.rel (0) target = $region5
    $region4: #{grouping_pallas.1} parent=1 // pred_region
      _
    $region5: #{grouping_pallas.1} parent=1 // pred_fallthru
      _
    // Predicated region
    $region6: #{grouping_pallas.1} parent=1 // pred_check
      _
    $region7: #{grouping_pallas.1} parent=1 // pred_check_branch
      %15 = sbr.rel (0) target = $region9
    $region8: #{grouping_pallas.1} parent=1 // pred_region
      _
    $region9: #{grouping_pallas.1} parent=1 // pred_fallthru
      _
    // Predicated region
    $region10: #{grouping_pallas.1} parent=1 // pred_check
      _
    $region11: #{grouping_pallas.1} parent=1 // pred_check_branch
      %17 = sbr.rel (0) target = $region13
    $region12: #{grouping_pallas.1} parent=1 // pred_region
      _
    $region13: #{grouping_pallas.1} parent=1 // pred_fallthru
      _
    %p18 = scmp.eq.s32.totalorder 0, 0
    // Predicated region
    $region14: #{grouping_pallas.1} parent=1 // pred_check
      %p19 = pneg %p18
    $region15: #{grouping_pallas.1} parent=1 // pred_check_branch
      %21 = sbr.rel (%p19) target = $region17
    $region16: #{grouping_pallas.1} parent=1 // pred_region
      %22 = vst [vmem:[#allocation2] sm:$0x3] 0.0
      %vm23 = vcmask 1024
      %24 = vst.msk [vmem:[#allocation3] sm:$0x3] %vm23, 0.0
      %25 = vst.msk [vmem:[#allocation4] sm:$0x3] %vm23, -inf
    $region17: #{grouping_pallas.1} parent=1 // pred_fallthru
      _
    %v26 = vld [vmem:[%s0] sm:$0xff]
    %v27 = vld [vmem:[%s0 + $0x8] sm:$0xff]
    %v28 = vld [vmem:[%s0 + $0x10] sm:$0xff]
    %v29 = vld [vmem:[%s0 + $0x18] sm:$0xff]
    %v30 = vld [vmem:[%s0 + $0x20] sm:$0xff]
    %v31 = vld [vmem:[%s0 + $0x28] sm:$0xff]
    %v32 = vld [vmem:[%s0 + $0x30] sm:$0xff]
    %v33 = vld [vmem:[%s0 + $0x38] sm:$0xff]
    %v34 = vld [vmem:[%s0 + $0x40] sm:$0xff]
    %v35 = vld [vmem:[%s0 + $0x48] sm:$0xff]
    %v36 = vld [vmem:[%s0 + $0x50] sm:$0xff]
    %v37 = vld [vmem:[%s0 + $0x58] sm:$0xff]
    %v38 = vld [vmem:[%s0 + $0x60] sm:$0xff]
    %v39 = vld [vmem:[%s0 + $0x68] sm:$0xff]
    %v40 = vld [vmem:[%s0 + $0x70] sm:$0xff]
    %v41 = vld [vmem:[%s0 + $0x78] sm:$0xff]
    %v42 = vld [vmem:[%s1] sm:$0xff]
    %v43 = vld [vmem:[%s1 + $0x8] sm:$0xff]
    %v44 = vld [vmem:[%s1 + $0x10] sm:$0xff]
    %v45 = vld [vmem:[%s1 + $0x18] sm:$0xff]
    %v46 = vld [vmem:[%s1 + $0x20] sm:$0xff]
    %v47 = vld [vmem:[%s1 + $0x28] sm:$0xff]
    %v48 = vld [vmem:[%s1 + $0x30] sm:$0xff]
    %v49 = vld [vmem:[%s1 + $0x38] sm:$0xff]
    %v50 = vld [vmem:[%s1 + $0x40] sm:$0xff]
    %v51 = vld [vmem:[%s1 + $0x48] sm:$0xff]
    %v52 = vld [vmem:[%s1 + $0x50] sm:$0xff]
    %v53 = vld [vmem:[%s1 + $0x58] sm:$0xff]
    %v54 = vld [vmem:[%s1 + $0x60] sm:$0xff]
    %v55 = vld [vmem:[%s1 + $0x68] sm:$0xff]
    %v56 = vld [vmem:[%s1 + $0x70] sm:$0xff]
    %v57 = vld [vmem:[%s1 + $0x78] sm:$0xff]
    %59 = vset.pattern.permute.xlu0 0
    %60 = vperm.xlu0 %59, %v42
    %v61 = vpop.permute.xlu0 %60
    %64 = vset.pattern.permute.xlu0 0
    %65 = vperm.xlu0 %64, %v43
    %v66 = vpop.permute.xlu0 %65
    %69 = vset.pattern.permute.xlu0 0
    %70 = vperm.xlu0 %69, %v44
    %v71 = vpop.permute.xlu0 %70
    %74 = vset.pattern.permute.xlu0 0
    %75 = vperm.xlu0 %74, %v45
    %v76 = vpop.permute.xlu0 %75
    %79 = vset.pattern.permute.xlu0 0
    %80 = vperm.xlu0 %79, %v46
    %v81 = vpop.permute.xlu0 %80
    %84 = vset.pattern.permute.xlu0 0
    %85 = vperm.xlu0 %84, %v47
    %v86 = vpop.permute.xlu0 %85
    %89 = vset.pattern.permute.xlu0 0
    %90 = vperm.xlu0 %89, %v48
    %v91 = vpop.permute.xlu0 %90
    %94 = vset.pattern.permute.xlu0 0
    %95 = vperm.xlu0 %94, %v49
    %v96 = vpop.permute.xlu0 %95
    %99 = vset.pattern.permute.xlu0 0
    %100 = vperm.xlu0 %99, %v50
    %v101 = vpop.permute.xlu0 %100
    %104 = vset.pattern.permute.xlu0 0
    %105 = vperm.xlu0 %104, %v51
    %v106 = vpop.permute.xlu0 %105
    %109 = vset.pattern.permute.xlu0 0
    %110 = vperm.xlu0 %109, %v52
    %v111 = vpop.permute.xlu0 %110
    %114 = vset.pattern.permute.xlu0 0
    %115 = vperm.xlu0 %114, %v53
    %v116 = vpop.permute.xlu0 %115
    %119 = vset.pattern.permute.xlu0 0
    %120 = vperm.xlu0 %119, %v54
    %v121 = vpop.permute.xlu0 %120
    %124 = vset.pattern.permute.xlu0 0
    %125 = vperm.xlu0 %124, %v55
    %v126 = vpop.permute.xlu0 %125
    %129 = vset.pattern.permute.xlu0 0
    %130 = vperm.xlu0 %129, %v56
    %v131 = vpop.permute.xlu0 %130
    %134 = vset.pattern.permute.xlu0 0
    %135 = vperm.xlu0 %134, %v57
    %v136 = vpop.permute.xlu0 %135
    %v138 = vmul.f32 %v61, %v26
    %v139 = vmul.f32 %v66, %v27
    %v140 = vmul.f32 %v71, %v28
    %v141 = vmul.f32 %v76, %v29
    %v142 = vmul.f32 %v81, %v30
    %v143 = vmul.f32 %v86, %v31
    %v144 = vmul.f32 %v91, %v32
    %v145 = vmul.f32 %v96, %v33
    %v146 = vmul.f32 %v101, %v34
    %v147 = vmul.f32 %v106, %v35
    %v148 = vmul.f32 %v111, %v36
    %v149 = vmul.f32 %v116, %v37
    %v150 = vmul.f32 %v121, %v38
    %v151 = vmul.f32 %v126, %v39
    %v152 = vmul.f32 %v131, %v40
    %v153 = vmul.f32 %v136, %v41
    %v154 = vadd.f32 %v138, %v139
    %v155 = vadd.f32 %v154, %v140
    %v156 = vadd.f32 %v155, %v141
    %v157 = vadd.f32 %v156, %v142
    %v158 = vadd.f32 %v157, %v143
    %v159 = vadd.f32 %v158, %v144
    %v160 = vadd.f32 %v159, %v145
    %v161 = vrot.slane %v160, 4
    %v162 = vadd.f32 %v160, %v161
    %v163 = vrot.slane %v162, 2
    %v164 = vadd.f32 %v162, %v163
    %v165 = vrot.slane %v164, 1
    %v166 = vadd.f32 %v164, %v165
    %v167 = vadd.f32 %v146, %v147
    %v168 = vadd.f32 %v167, %v148
    %v169 = vadd.f32 %v168, %v149
    %v170 = vadd.f32 %v169, %v150
    %v171 = vadd.f32 %v170, %v151
    %v172 = vadd.f32 %v171, %v152
    %v173 = vadd.f32 %v172, %v153
    %v174 = vrot.slane %v173, 4
    %v175 = vadd.f32 %v173, %v174
    %v176 = vrot.slane %v175, 2
    %v177 = vadd.f32 %v175, %v176
    %v178 = vrot.slane %v177, 1
    %v179 = vadd.f32 %v177, %v178
    %v180 = vld [vmem:[#allocation2] sm:$0x3]
    %vm183 = vcmask 1041409
    %v184 = vsel %vm183, %v179, %v166
    %v186 = vadd.f32 %v180, %v184
    %187 = vst [vmem:[#allocation2] sm:$0x3] %v186
    %v188 = vld [vmem:[#allocation3] sm:$0x3]
    %vm189 = vcmask 7168
    %v190 = vsel %vm189, %v42, 0.0
    %v191 = vsel %vm189, %v43, 0.0
    %v192 = vadd.f32 %v190, %v191
    %v193 = vsel %vm189, %v44, 0.0
    %v194 = vadd.f32 %v192, %v193
    %v195 = vsel %vm189, %v45, 0.0
    %v196 = vadd.f32 %v194, %v195
    %v197 = vsel %vm189, %v46, 0.0
    %v198 = vadd.f32 %v196, %v197
    %v199 = vsel %vm189, %v47, 0.0
    %v200 = vadd.f32 %v198, %v199
    %v201 = vsel %vm189, %v48, 0.0
    %v202 = vadd.f32 %v200, %v201
    %v203 = vsel %vm189, %v49, 0.0
    %v204 = vadd.f32 %v202, %v203
    %v205 = vrot.slane %v204, 4
    %v206 = vadd.f32 %v204, %v205
    %v207 = vrot.slane %v206, 2
    %v208 = vadd.f32 %v206, %v207
    %v209 = vrot.slane %v208, 1
    %v210 = vadd.f32 %v208, %v209
    %v211 = vsel %vm189, %v50, 0.0
    %v212 = vsel %vm189, %v51, 0.0
    %v213 = vadd.f32 %v211, %v212
    %v214 = vsel %vm189, %v52, 0.0
    %v215 = vadd.f32 %v213, %v214
    %v216 = vsel %vm189, %v53, 0.0
    %v217 = vadd.f32 %v215, %v216
    %v218 = vsel %vm189, %v54, 0.0
    %v219 = vadd.f32 %v217, %v218
    %v220 = vsel %vm189, %v55, 0.0
    %v221 = vadd.f32 %v219, %v220
    %v222 = vsel %vm189, %v56, 0.0
    %v223 = vadd.f32 %v221, %v222
    %v224 = vsel %vm189, %v57, 0.0
    %v225 = vadd.f32 %v223, %v224
    %v226 = vrot.slane %v225, 4
    %v227 = vadd.f32 %v225, %v226
    %v228 = vrot.slane %v227, 2
    %v229 = vadd.f32 %v227, %v228
    %v230 = vrot.slane %v229, 1
    %v231 = vadd.f32 %v229, %v230
    %v234 = vsel %vm183, %v231, %v210
    %v236 = vadd.f32 %v188, %v234
    %vm237 = vcmask 1024
    %238 = vst.msk [vmem:[#allocation3] sm:$0x3] %vm237, %v236
    %v239 = vld [vmem:[#allocation4] sm:$0x3]
    %v240 = vsel %vm189, %v42, -inf
    %v241 = vsel %vm189, %v43, -inf
    %v242 = vsel %vm189, %v44, -inf
    %v243 = vmax.f32 %v240, %v242
    %v244 = vsel %vm189, %v45, -inf
    %v245 = vmax.f32 %v241, %v244
    %v246 = vsel %vm189, %v46, -inf
    %v247 = vmax.f32 %v243, %v246
    %v248 = vsel %vm189, %v47, -inf
    %v249 = vmax.f32 %v245, %v248
    %v250 = vsel %vm189, %v48, -inf
    %v251 = vmax.f32 %v247, %v250
    %v252 = vsel %vm189, %v49, -inf
    %v253 = vmax.f32 %v249, %v252
    %v254 = vmax.f32 %v251, %v253
    %v255 = vrot.slane %v254, 4
    %v256 = vmax.f32 %v254, %v255
    %v257 = vrot.slane %v256, 2
    %v258 = vmax.f32 %v256, %v257
    %v259 = vrot.slane %v258, 1
    %v260 = vmax.f32 %v258, %v259
    %v261 = vsel %vm189, %v50, -inf
    %v262 = vsel %vm189, %v51, -inf
    %v263 = vsel %vm189, %v52, -inf
    %v264 = vmax.f32 %v261, %v263
    %v265 = vsel %vm189, %v53, -inf
    %v266 = vmax.f32 %v262, %v265
    %v267 = vsel %vm189, %v54, -inf
    %v268 = vmax.f32 %v264, %v267
    %v269 = vsel %vm189, %v55, -inf
    %v270 = vmax.f32 %v266, %v269
    %v271 = vsel %vm189, %v56, -inf
    %v272 = vmax.f32 %v268, %v271
    %v273 = vsel %vm189, %v57, -inf
    %v274 = vmax.f32 %v270, %v273
    %v275 = vmax.f32 %v272, %v274
    %v276 = vrot.slane %v275, 4
    %v277 = vmax.f32 %v275, %v276
    %v278 = vrot.slane %v277, 2
    %v279 = vmax.f32 %v277, %v278
    %v280 = vrot.slane %v279, 1
    %v281 = vmax.f32 %v279, %v280
    %v284 = vsel %vm183, %v281, %v260
    %v286 = vmax.f32 %v239, %v284
    %287 = vst.msk [vmem:[#allocation4] sm:$0x3] %vm237, %v286
    // Predicated region
    $region18: #{grouping_pallas.1} parent=1 // pred_check
      %p288 = pneg %p18
    $region19: #{grouping_pallas.1} parent=1 // pred_check_branch
      %290 = sbr.rel (%p288) target = $region21
    $region20: #{grouping_pallas.1} parent=1 // pred_region
      %v291 = vld [vmem:[%s2] sm:$0xff]
      %v292 = vld [vmem:[#allocation2] sm:$0x3]
      %v293 = vld [vmem:[#allocation3] sm:$0x3]
      %v296 = vunpack.c.l.s4 1966171168
      %v297 = vunpack.c.0.s8 %v296
      %v298 = vlaneseq
      %v299 = vshrl.u32 %v298, 7
      %v300 = vsub.s32 %v297, %v299
      %v301 = vrot.slane %v292, %v300
      %v302 = vcombine.high %v301, %v301
      %v304 = vunpack.c.l.s4 1966171168
      %v305 = vunpack.c.0.s8 %v304
      %v306 = vlaneseq
      %v307 = vshrl.u32 %v306, 7
      %v308 = vsub.s32 %v305, %v307
      %v309 = vrot.slane %v301, %v308
      %v311 = vunpack.c.l.s4 1966171168
      %v312 = vunpack.c.0.s8 %v311
      %v313 = vlaneseq
      %v314 = vshrl.u32 %v313, 7
      %v315 = vsub.s32 %v312, %v314
      %v316 = vrot.slane %v302, %v315
      %v319 = vunpack.c.l.s4 1966171168
      %v320 = vunpack.c.0.s8 %v319
      %v321 = vlaneseq
      %v322 = vshrl.u32 %v321, 7
      %v323 = vsub.s32 %v320, %v322
      %v324 = vrot.slane %v293, %v323
      %v325 = vcombine.high %v324, %v324
      %v327 = vunpack.c.l.s4 1966171168
      %v328 = vunpack.c.0.s8 %v327
      %v329 = vlaneseq
      %v330 = vshrl.u32 %v329, 7
      %v331 = vsub.s32 %v328, %v330
      %v332 = vrot.slane %v324, %v331
      %v334 = vunpack.c.l.s4 1966171168
      %v335 = vunpack.c.0.s8 %v334
      %v336 = vlaneseq
      %v337 = vshrl.u32 %v336, 7
      %v338 = vsub.s32 %v335, %v337
      %v339 = vrot.slane %v325, %v338
      %v340 = vlaneseq
      %v341 = vshrl.u32 %v340, 7
      %v342 = vsub.s32 0, %v341
      %v343 = vrot.slane %v332, %v342
      %v344 = vlaneseq
      %v345 = vshrl.u32 %v344, 7
      %v346 = vsub.s32 0, %v345
      %v347 = vrot.slane %v339, %v346
      %348 = vset.pattern.permute.xlu0 0
      %349 = vperm.xlu0 %348, %v343
      %v350 = vpop.permute.xlu0 %349
      %352 = vset.pattern.permute.xlu0 0
      %353 = vperm.xlu0 %352, %v347
      %v354 = vpop.permute.xlu0 %353
      %v356 = vmul.f32 %v350, %v291
      %v357 = vmul.f32 %v354, %v291
      %v358 = vlaneseq
      %v359 = vshrl.u32 %v358, 7
      %v360 = vsub.s32 0, %v359
      %v361 = vrot.slane %v309, %v360
      %v362 = vlaneseq
      %v363 = vshrl.u32 %v362, 7
      %v364 = vsub.s32 0, %v363
      %v365 = vrot.slane %v316, %v364
      %v368 = vsub.f32 %v361, %v356
      %v369 = vsub.f32 %v365, %v357
      %v370 = vmul.f32 %v368, %v368
      %v371 = vmul.f32 %v369, %v369
      %372 = vadd.xlane.f32.xlu0 %v370
      %v373 = vpop.xlane.xlu0 %372
      %374 = vadd.xlane.f32.xlu0 %v371
      %v375 = vpop.xlane.xlu0 %374
      %v376 = vrsqrt.pop %v373
      %v377 = vmul.f32 %v373, %v376
      %vm378 = vcmp.eq.f32.partialorder %v373, inf
      %v379 = vsel %vm378, %v373, %v377
      %vm380 = vcmp.eq.f32.partialorder %v373, 0.0
      %v381 = vand.u32 %v373, 2147483648
      %v382 = vsel %vm380, %v381, %v379
      %v383 = vrsqrt.pop %v375
      %v384 = vmul.f32 %v375, %v383
      %vm385 = vcmp.eq.f32.partialorder %v375, inf
      %v386 = vsel %vm385, %v375, %v384
      %vm387 = vcmp.eq.f32.partialorder %v375, 0.0
      %v388 = vand.u32 %v375, 2147483648
      %v389 = vsel %vm387, %v388, %v386
      %v390 = vadd.f32 %v382, 1e-06
      %v391 = vadd.f32 %v389, 1e-06
      %v392 = vrcp.pop %v390
      %v393 = vmul.f32 %v368, %v392
      %v394 = vrcp.pop %v391
      %v395 = vmul.f32 %v369, %v394
      %396 = vst [vmem:[#allocation5] sm:$0xff] %v393
      %397 = vst [vmem:[#allocation5 + $0x8] sm:$0xff] %v395
      %v398 = vld [vmem:[#allocation4] sm:$0x3]
      %v401 = vunpack.c.l.s4 1966171168
      %v402 = vunpack.c.0.s8 %v401
      %v403 = vlaneseq
      %v404 = vshrl.u32 %v403, 7
      %v405 = vsub.s32 %v402, %v404
      %v406 = vrot.slane %v398, %v405
      %v407 = vcombine.high %v406, %v406
      %v409 = vunpack.c.l.s4 1966171168
      %v410 = vunpack.c.0.s8 %v409
      %v411 = vlaneseq
      %v412 = vshrl.u32 %v411, 7
      %v413 = vsub.s32 %v410, %v412
      %v414 = vrot.slane %v406, %v413
      %v416 = vunpack.c.l.s4 1966171168
      %v417 = vunpack.c.0.s8 %v416
      %v418 = vlaneseq
      %v419 = vshrl.u32 %v418, 7
      %v420 = vsub.s32 %v417, %v419
      %v421 = vrot.slane %v407, %v420
      %422 = vset.pattern.permute.xlu0 0
      %423 = vperm.xlu0 %422, %v414
      %v424 = vpop.permute.xlu0 %423
      %v426 = vlaneseq
      %v427 = vshrl.u32 %v426, 7
      %v428 = vsub.s32 0, %v427
      %v429 = vrot.slane %v424, %v428
      %430 = vset.pattern.permute.xlu0 0
      %431 = vperm.xlu0 %430, %v421
      %v432 = vpop.permute.xlu0 %431
      %v434 = vlaneseq
      %v435 = vshrl.u32 %v434, 7
      %v436 = vsub.s32 0, %v435
      %v437 = vrot.slane %v432, %v436
      %vm438 = vcmask 57344
      %439 = vst.msk [vmem:[#allocation7] sm:$0x1] %vm438, %v429
      %440 = vst.msk [vmem:[#allocation7 + $0x1] sm:$0x1] %vm438, %v437
    $region21: #{grouping_pallas.1} parent=1 // pred_fallthru
      _
    // Predicated region
    $region22: #{grouping_pallas.1} parent=1 // pred_check
      _
    $region23: #{grouping_pallas.1} parent=1 // pred_check_branch
      %442 = sbr.rel (0) target = $region25
    $region24: #{grouping_pallas.1} parent=1 // pred_region
      %s444 = ssub.s32 256, 256
      %445 = vsyncadd [#allocation6], %s444
      %s446 = sshll.u32 [#allocation5], 4
      %s447 = int_to_ptr.vmem [resolvable:$true] %s446
      %452 = dma.vmem_to_hbm [thread:$0]  %s447, 256, %s3, [#allocation6], 128, 128, 8
    $region25: #{grouping_pallas.1} parent=1 // pred_fallthru
      _
    // Predicated region
    $region26: #{grouping_pallas.1} parent=1 // pred_check
      _
    $region27: #{grouping_pallas.1} parent=1 // pred_check_branch
      %454 = sbr.rel (0) target = $region29
    $region28: #{grouping_pallas.1} parent=1 // pred_region
      %s456 = ssub.s32 32, 32
      %457 = vsyncadd [#allocation8], %s456
      %s458 = sshll.u32 [#allocation7], 4
      %s459 = int_to_ptr.vmem [resolvable:$true] %s458
      %464 = dma.vmem_to_hbm [thread:$0]  %s459, 32, %s4, [#allocation8], 16, 16, 1
    $region29: #{grouping_pallas.1} parent=1 // pred_fallthru
      _
    // Predicated region
    $region30: #{grouping_pallas.1} parent=1 // pred_check
      _
    $region31: #{grouping_pallas.1} parent=1 // pred_check_branch
      %466 = sbr.rel (0) target = $region33
    $region32: #{grouping_pallas.1} parent=1 // pred_region
      %467 = dma.done [#allocation6], 256
    $region33: #{grouping_pallas.1} parent=1 // pred_fallthru
      _
    // Predicated region
    $region34: #{grouping_pallas.1} parent=1 // pred_check
      _
    $region35: #{grouping_pallas.1} parent=1 // pred_check_branch
      %469 = sbr.rel (0) target = $region37
    $region36: #{grouping_pallas.1} parent=1 // pred_region
      %470 = dma.done [#allocation8], 32
    $region37: #{grouping_pallas.1} parent=1 // pred_fallthru
      _
    %471 = vsyncpa [#allocation6], 1
    %472 = vsyncpa [#allocation8], 1

</llo_original>
